<compile_context>
chip_gen: v7x
topology: tpu7x:2x2x1
jax: 0.10.0
libtpu: 0.0.40
codegen_flags: <defaults>
</compile_context>

<pallas_src>
import jax
import jax.numpy as jnp
import numpy as np
from jax.experimental import pallas as pl
from jax.experimental.pallas import tpu as pltpu

# ----------------------------- config ---------------------------------------
N_BATCH = 2
C_IN = 4
H = W_SP = 16
A = H * W_SP                 # anchors = spatial positions (1x1 head)
NUM_CLASSES = 3
OUT_CH = 5 + NUM_CLASSES     # (cx, cy, w, h, obj, cls...)
TEST_CONF = 0.3              # exp.test_conf
NMS_THRE = 0.5               # exp.nmsthre

# Plain Python floats only (jnp scalars at module scope get captured as kernel
# constants and break tracing).
_NEG = -1e30                 # "minus infinity" sentinel for masked scores
_NEG_GATE = -1e29            # "is anything still alive?" threshold
_EXP_CLAMP = 43.0            # exp(43)^2 ~ 2e37 keeps area finite in float32


# --------------------------- fused Pallas kernel ------------------------------
def fused_post_kernel(x_ref, w_ref, b_ref, out5_ref, keep_ref):
    """Head + decode + conf mask + greedy batched NMS for image 0 (channel-major).

    x_ref:    (C_IN, A)         VMEM  activations, A on the lane axis
    w_ref:    (C_IN, OUT_CH, 1) VMEM  per-input-channel 1x1-conv weight columns
    b_ref:    (OUT_CH, 1)       VMEM  bias column
    out5_ref: (5, A)            VMEM  [x1, y1, x2, y2, obj*cls_conf]
    keep_ref: (1, A)            VMEM  1.0 where the box survives conf + NMS
    """
    x = x_ref[...]                                            # (C_IN, A)

    # ---- 1x1-conv head: C_IN full-vreg FMAs on an (OUT_CH, A) slab (VPU) ----
    raw = b_ref[...] + w_ref[0] * x[0:1, :]                   # (8,1)+(8,1)*(1,A)
    for c in range(1, C_IN):
        raw = raw + w_ref[c] * x[c:c + 1, :]
    # rows: [cx, cy, log w, log h, obj logit, cls logits...]

    xy = raw[0:2, :]                                          # [cx, cy]
    wh = jnp.exp(jnp.minimum(raw[2:4, :], _EXP_CLAMP))        # [bw, bh], finite
    sig = jax.nn.sigmoid(raw[4:OUT_CH, :])                    # [obj, cls...]
    obj = sig[0:1, :]

    half = 0.5 * wh
    tl = xy - half                                            # (2, A) [x1, y1]
    br = xy + half                                            # (2, A) [x2, y2]

    # class max / argmax (NUM_CLASSES tiny -> unrolled compare/select)
    cls_conf = sig[1:2, :]
    cls_pred = jnp.zeros_like(cls_conf)
    for k in range(2, NUM_CLASSES + 1):
        row = sig[k:k + 1, :]
        better = row > cls_conf                               # first max wins ties
        cls_conf = jnp.where(better, row, cls_conf)
        cls_pred = jnp.where(better, float(k - 1), cls_pred)

    score = obj * cls_conf                                    # pred[:,4]*pred[:,5]
    area = (br[0:1, :] - tl[0:1, :]) * (br[1:2, :] - tl[1:2, :])
    conf_ok = score >= TEST_CONF                              # (1, A) bool

    # ---- selection key: lane id in the low 8 mantissa bits (unique max) -----
    # score > 0, so int ordering of the bits == float ordering; clearing 8 low
    # mantissa bits (<2^-15 relative) never reorders meaningfully different
    # scores, and ties fall back to lowest lane index (stable, torch-like).
    lane_i = jax.lax.broadcasted_iota(jnp.int32, (1, A), 1)
    sbits = jax.lax.bitcast_convert_type(score, jnp.int32)
    key = jax.lax.bitcast_convert_type((sbits & -256) | (A - 1 - lane_i),
                                       jnp.float32)
    masked0 = jnp.where(conf_ok, key, _NEG)

    # ---- sublane-packed box slab: one (8, A) value instead of 7 (1, A) rows --
    # rows: [x1, y1, -x2, -y2, area, cls, score, pad]
    slab = jnp.concatenate([tl, -br, area, cls_pred, score, score], axis=0)

    # ---- greedy per-class NMS (torchvision.ops.batched_nms semantics) --------
    def cond(carry):
        _, _, m = carry
        return m[0, 0] > _NEG_GATE            # early exit: nothing left to keep

    def body(carry):
        msk, keep, m = carry
        onehot = msk >= m                                     # exactly one lane
        sel = jnp.max(jnp.where(onehot, slab, _NEG),
                      axis=1, keepdims=True)                  # (8, 1) selected box
        # intersection corners in one (4, A) max (x2/y2 rows are negated)
        icorn = jnp.maximum(sel[0:4, :], slab[0:4, :])
        iw = jnp.maximum(-(icorn[2:3, :] + icorn[0:1, :]), 0.0)
        ih = jnp.maximum(-(icorn[3:4, :] + icorn[1:2, :]), 0.0)
        inter = iw * ih
        union = sel[4:5, :] + slab[4:5, :] - inter
        # iou > thr  <=>  inter > thr * union   (division-free), per-class NMS
        sup = (inter > NMS_THRE * union) & (slab[5:6, :] == sel[5:6, :])
        keep = jnp.where(onehot, 1.0, keep)       # selected box is kept ...
        msk = jnp.where(onehot | sup, _NEG, msk)  # ... then removed + its victims
        m = jnp.max(msk, axis=1, keepdims=True)   # feeds next iteration's cond
        return msk, keep, m

    keep0 = jnp.zeros_like(score)
    m0 = jnp.max(masked0, axis=1, keepdims=True)
    _, keep_nms, _ = jax.lax.while_loop(cond, body, (masked0, keep0, m0))

    # torch.cat((pred[:, :4], (pred[:, 4] * pred[:, 5])[:, None]), dim=1),
    # stored channel-major so every store stays lane-dense (A = 2 x 128).
    out5_ref[...] = jnp.concatenate([tl, br, score], axis=0)            # (5, A)
    keep_ref[...] = keep_nms                                            # (1, A)


# ------------------------------ wrapper ---------------------------------------
@jax.jit
def post_model_forward(batch, w, b):
    """JAX/Pallas equivalent of PostModel.forward (image 0, fixed-size outputs).

    batch: (N, C_IN, H, W) NCHW like the PyTorch module; w: (C_IN, OUT_CH)
    1x1-conv weights; b: (1, OUT_CH) bias.
    Returns (out5, keep): (A, 5) rows [x1, y1, x2, y2, obj*cls_conf] plus the
    boolean mask of rows surviving the confidence threshold + NMS.
    """
    n, c, h, w_sp = batch.shape
    a = h * w_sp
    # postprocess(...)[0] only uses image 0; NCHW -> (C, A) is a pure reshape.
    x0 = batch[0].reshape(c, a).astype(jnp.float32)
    w_cols = w.astype(jnp.float32).reshape(c, OUT_CH, 1)   # per-channel columns
    b_col = b.astype(jnp.float32).reshape(OUT_CH, 1)

    out5_cm, keep_f = pl.pallas_call(
        fused_post_kernel,
        out_shape=(
            jax.ShapeDtypeStruct((5, a), jnp.float32),
            jax.ShapeDtypeStruct((1, a), jnp.float32),
        ),
        in_specs=[
            pl.BlockSpec(memory_space=pltpu.MemorySpace.VMEM),   # activations
            pl.BlockSpec(memory_space=pltpu.MemorySpace.VMEM),   # weight columns
            pl.BlockSpec(memory_space=pltpu.MemorySpace.VMEM),   # bias column
        ],
        out_specs=(
            pl.BlockSpec(memory_space=pltpu.MemorySpace.VMEM),
            pl.BlockSpec(memory_space=pltpu.MemorySpace.VMEM),
        ),
    )(x0, w_cols, b_col)

    # layout plumbing only: channel-major -> row-major (A, 5), float -> bool.
    out5 = out5_cm.T
    keep = keep_f[0] > 0.5
    # TODO(synk): PostModel returns a dynamically-sized Nx5 tensor (or None);
    # dynamic output shapes are not expressible under jit, so we return the
    # fixed (A, 5) array together with the boolean keep mask instead.
    return out5, keep


# -------------------------- host references -----------------------------------
def _reference_decode(batch, w, b):
    """Pure-NumPy decode (head + YOLOX decode), for the tolerance check."""
    x = np.asarray(batch, np.float32)[0].reshape(C_IN, A)
    w_np = np.asarray(w, np.float32)
    b_np = np.asarray(b, np.float32).reshape(OUT_CH, 1)
    raw = w_np.T @ x + b_np                                   # (OUT_CH, A)
    cx, cy = raw[0], raw[1]
    bw = np.exp(np.minimum(raw[2], _EXP_CLAMP))
    bh = np.exp(np.minimum(raw[3], _EXP_CLAMP))
    sig = 1.0 / (1.0 + np.exp(-raw[4:]))
    obj, cls = sig[0], sig[1:]
    x1, y1 = cx - 0.5 * bw, cy - 0.5 * bh
    x2, y2 = cx + 0.5 * bw, cy + 0.5 * bh
    score = obj * cls.max(axis=0)
    out5 = np.stack([x1, y1, x2, y2, score], axis=1).astype(np.float32)
    cls_pred = np.argmax(raw[5:], axis=0).astype(np.int32)    # == argmax(sigmoid)
    return out5, cls_pred


def _reference_nms(out5, cls_pred):
    """Brute-force greedy per-class NMS on the kernel's own decoded boxes,
    using the identical mantissa lane tie-break and division-free IoU test."""
    out5 = np.asarray(out5, np.float32)
    x1 = out5[:, 0].astype(np.float32)
    y1 = out5[:, 1].astype(np.float32)
    x2 = out5[:, 2].astype(np.float32)
    y2 = out5[:, 3].astype(np.float32)
    score = out5[:, 4].astype(np.float32)
    area = (x2 - x1) * (y2 - y1)
    bits = np.ascontiguousarray(score).view(np.uint32)
    lanes = np.arange(A, dtype=np.uint32)
    key = (bits & np.uint32(0xFFFFFF00)) | (np.uint32(A - 1) - lanes)
    alive = score >= np.float32(TEST_CONF)
    keep = np.zeros(A, dtype=bool)
    idx = np.arange(A)
    while alive.any():
        i = int(np.argmax(np.where(alive, key, np.uint32(0))))
        keep[i] = True
        ix1 = np.maximum(x1[i], x1)
        iy1 = np.maximum(y1[i], y1)
        ix2 = np.minimum(x2[i], x2)
        iy2 = np.minimum(y2[i], y2)
        iw = np.maximum(ix2 - ix1, np.float32(0.0))
        ih = np.maximum(iy2 - iy1, np.float32(0.0))
        inter = iw * ih
        union = area[i] + area - inter
        sup = (inter > np.float32(NMS_THRE) * union) & (cls_pred == cls_pred[i])
        alive &= ~(sup | (idx == i))
    return keep


# ------------------------------ main -----------------------------------------
if __name__ == "__main__":
    key = jax.random.PRNGKey(0)
    k_x, k_w, k_b = jax.random.split(key, 3)

    batch = jax.random.normal(k_x, (N_BATCH, C_IN, H, W_SP), dtype=jnp.float32)
    # Deterministic synthetic 1x1-conv head parameters.
    w = 0.5 * jax.random.normal(k_w, (C_IN, OUT_CH), dtype=jnp.float32)
    b = 0.1 * jax.random.normal(k_b, (1, OUT_CH), dtype=jnp.float32)

    out5, keep = post_model_forward(batch, w, b)
    jax.block_until_ready((out5, keep))

    assert out5.shape == (A, 5) and out5.dtype == jnp.float32
    assert keep.shape == (A,) and keep.dtype == jnp.bool_

    # 1) decode correctness vs. a pure-NumPy reference (tolerance check).
    ref5, cls_ref = _reference_decode(batch, w, b)
    assert jnp.allclose(out5, ref5, atol=1e-3, rtol=1e-3)

    # 2) every kept box passes the confidence threshold.
    assert bool(jnp.all(jnp.where(keep, out5[:, 4], 1.0) >= TEST_CONF))

    # 3) NMS selection vs. a brute-force greedy reference driven by the
    #    kernel's own decoded boxes (exact ordering/IoU arithmetic match).
    keep_ref = _reference_nms(np.asarray(out5), cls_ref)
    assert np.array_equal(np.asarray(keep), keep_ref)

    print("KERNEL_OK")
</pallas_src>

<mosaic_0001>
module attributes {stable_mosaic.version = 11 : i64} {
  func.func @fused_post_kernel(%arg0: memref<4x256xf32, #tpu.memory_space<vmem>>, %arg1: memref<4x8x1xf32, #tpu.memory_space<vmem>>, %arg2: memref<8x1xf32, #tpu.memory_space<vmem>>, %arg3: memref<5x256xf32, #tpu.memory_space<vmem>>, %arg4: memref<1x256xf32, #tpu.memory_space<vmem>>) attributes {dimension_semantics = [], scalar_prefetch = 0 : i64, scratch_operands = 0 : i64, tpu.core_type = #tpu.core_type<tc>} {
    %c0 = arith.constant 0 : index
    %c0_0 = arith.constant 0 : index
    %0 = vector.load %arg0[%c0, %c0_0] : memref<4x256xf32, #tpu.memory_space<vmem>>, vector<4x256xf32>
    %c0_1 = arith.constant 0 : index
    %c0_2 = arith.constant 0 : index
    %1 = vector.load %arg2[%c0_1, %c0_2] : memref<8x1xf32, #tpu.memory_space<vmem>>, vector<8x1xf32>
    %c0_3 = arith.constant 0 : index
    %c0_4 = arith.constant 0 : index
    %c0_5 = arith.constant 0 : index
    %2 = vector.load %arg1[%c0_3, %c0_4, %c0_5] : memref<4x8x1xf32, #tpu.memory_space<vmem>>, vector<1x8x1xf32>
    %3 = vector.shape_cast %2 : vector<1x8x1xf32> to vector<8x1xf32>
    %4 = vector.extract_strided_slice %0 {offsets = [0, 0], sizes = [1, 256], strides = [1, 1]} : vector<4x256xf32> to vector<1x256xf32>
    %5 = vector.broadcast %3 : vector<8x1xf32> to vector<8x256xf32>
    %6 = vector.broadcast %4 : vector<1x256xf32> to vector<8x256xf32>
    %7 = arith.mulf %5, %6 : vector<8x256xf32>
    %8 = vector.broadcast %1 : vector<8x1xf32> to vector<8x256xf32>
    %9 = arith.addf %8, %7 : vector<8x256xf32>
    %c1 = arith.constant 1 : index
    %c0_6 = arith.constant 0 : index
    %c0_7 = arith.constant 0 : index
    %10 = vector.load %arg1[%c1, %c0_6, %c0_7] : memref<4x8x1xf32, #tpu.memory_space<vmem>>, vector<1x8x1xf32>
    %11 = vector.shape_cast %10 : vector<1x8x1xf32> to vector<8x1xf32>
    %12 = vector.extract_strided_slice %0 {offsets = [1, 0], sizes = [1, 256], strides = [1, 1]} : vector<4x256xf32> to vector<1x256xf32>
    %13 = vector.broadcast %11 : vector<8x1xf32> to vector<8x256xf32>
    %14 = vector.broadcast %12 : vector<1x256xf32> to vector<8x256xf32>
    %15 = arith.mulf %13, %14 : vector<8x256xf32>
    %16 = arith.addf %9, %15 : vector<8x256xf32>
    %c2 = arith.constant 2 : index
    %c0_8 = arith.constant 0 : index
    %c0_9 = arith.constant 0 : index
    %17 = vector.load %arg1[%c2, %c0_8, %c0_9] : memref<4x8x1xf32, #tpu.memory_space<vmem>>, vector<1x8x1xf32>
    %18 = vector.shape_cast %17 : vector<1x8x1xf32> to vector<8x1xf32>
    %19 = vector.extract_strided_slice %0 {offsets = [2, 0], sizes = [1, 256], strides = [1, 1]} : vector<4x256xf32> to vector<1x256xf32>
    %20 = vector.broadcast %18 : vector<8x1xf32> to vector<8x256xf32>
    %21 = vector.broadcast %19 : vector<1x256xf32> to vector<8x256xf32>
    %22 = arith.mulf %20, %21 : vector<8x256xf32>
    %23 = arith.addf %16, %22 : vector<8x256xf32>
    %c3 = arith.constant 3 : index
    %c0_10 = arith.constant 0 : index
    %c0_11 = arith.constant 0 : index
    %24 = vector.load %arg1[%c3, %c0_10, %c0_11] : memref<4x8x1xf32, #tpu.memory_space<vmem>>, vector<1x8x1xf32>
    %25 = vector.shape_cast %24 : vector<1x8x1xf32> to vector<8x1xf32>
    %26 = vector.extract_strided_slice %0 {offsets = [3, 0], sizes = [1, 256], strides = [1, 1]} : vector<4x256xf32> to vector<1x256xf32>
    %27 = vector.broadcast %25 : vector<8x1xf32> to vector<8x256xf32>
    %28 = vector.broadcast %26 : vector<1x256xf32> to vector<8x256xf32>
    %29 = arith.mulf %27, %28 : vector<8x256xf32>
    %30 = arith.addf %23, %29 : vector<8x256xf32>
    %31 = vector.extract_strided_slice %30 {offsets = [0, 0], sizes = [2, 256], strides = [1, 1]} : vector<8x256xf32> to vector<2x256xf32>
    %32 = vector.extract_strided_slice %30 {offsets = [2, 0], sizes = [2, 256], strides = [1, 1]} : vector<8x256xf32> to vector<2x256xf32>
    %cst = arith.constant 4.300000e+01 : f32
    %33 = vector.broadcast %cst : f32 to vector<2x256xf32>
    %34 = arith.minimumf %32, %33 : vector<2x256xf32>
    %35 = math.exp %34 : vector<2x256xf32>
    %36 = vector.extract_strided_slice %30 {offsets = [4, 0], sizes = [4, 256], strides = [1, 1]} : vector<8x256xf32> to vector<4x256xf32>
    %37 = arith.negf %36 : vector<4x256xf32>
    %38 = math.exp %37 : vector<4x256xf32>
    %cst_12 = arith.constant 1.000000e+00 : f32
    %39 = vector.broadcast %cst_12 : f32 to vector<4x256xf32>
    %40 = arith.addf %39, %38 : vector<4x256xf32>
    %41 = arith.divf %39, %40 : vector<4x256xf32>
    %42 = vector.extract_strided_slice %41 {offsets = [0, 0], sizes = [1, 256], strides = [1, 1]} : vector<4x256xf32> to vector<1x256xf32>
    %cst_13 = arith.constant 5.000000e-01 : f32
    %43 = vector.broadcast %cst_13 : f32 to vector<2x256xf32>
    %44 = arith.mulf %43, %35 : vector<2x256xf32>
    %45 = arith.subf %31, %44 : vector<2x256xf32>
    %46 = arith.addf %31, %44 : vector<2x256xf32>
    %47 = vector.extract_strided_slice %41 {offsets = [1, 0], sizes = [1, 256], strides = [1, 1]} : vector<4x256xf32> to vector<1x256xf32>
    %cst_14 = arith.constant 0.000000e+00 : f32
    %48 = vector.broadcast %cst_14 : f32 to vector<1x256xf32>
    %49 = vector.extract_strided_slice %41 {offsets = [2, 0], sizes = [1, 256], strides = [1, 1]} : vector<4x256xf32> to vector<1x256xf32>
    %50 = arith.cmpf ogt, %49, %47 : vector<1x256xf32>
    %51 = arith.select %50, %49, %47 : vector<1x256xi1>, vector<1x256xf32>
    %cst_15 = arith.constant 1.000000e+00 : f32
    %52 = vector.broadcast %cst_15 : f32 to vector<1x256xf32>
    %53 = arith.select %50, %52, %48 : vector<1x256xi1>, vector<1x256xf32>
    %54 = vector.extract_strided_slice %41 {offsets = [3, 0], sizes = [1, 256], strides = [1, 1]} : vector<4x256xf32> to vector<1x256xf32>
    %55 = arith.cmpf ogt, %54, %51 : vector<1x256xf32>
    %56 = arith.select %55, %54, %51 : vector<1x256xi1>, vector<1x256xf32>
    %cst_16 = arith.constant 2.000000e+00 : f32
    %57 = vector.broadcast %cst_16 : f32 to vector<1x256xf32>
    %58 = arith.select %55, %57, %53 : vector<1x256xi1>, vector<1x256xf32>
    %59 = arith.mulf %42, %56 : vector<1x256xf32>
    %60 = vector.extract_strided_slice %46 {offsets = [0, 0], sizes = [1, 256], strides = [1, 1]} : vector<2x256xf32> to vector<1x256xf32>
    %61 = vector.extract_strided_slice %45 {offsets = [0, 0], sizes = [1, 256], strides = [1, 1]} : vector<2x256xf32> to vector<1x256xf32>
    %62 = arith.subf %60, %61 : vector<1x256xf32>
    %63 = vector.extract_strided_slice %46 {offsets = [1, 0], sizes = [1, 256], strides = [1, 1]} : vector<2x256xf32> to vector<1x256xf32>
    %64 = vector.extract_strided_slice %45 {offsets = [1, 0], sizes = [1, 256], strides = [1, 1]} : vector<2x256xf32> to vector<1x256xf32>
    %65 = arith.subf %63, %64 : vector<1x256xf32>
    %66 = arith.mulf %62, %65 : vector<1x256xf32>
    %cst_17 = arith.constant 3.000000e-01 : f32
    %67 = vector.broadcast %cst_17 : f32 to vector<1x256xf32>
    %68 = arith.cmpf oge, %59, %67 : vector<1x256xf32>
    %69 = tpu.iota {dimensions = array<i32: 1>} : vector<1x256xi32>
    %70 = tpu.bitcast %59 : vector<1x256xf32> -> vector<1x256xi32>
    %c-256_i32 = arith.constant -256 : i32
    %71 = vector.broadcast %c-256_i32 : i32 to vector<1x256xi32>
    %72 = arith.andi %70, %71 : vector<1x256xi32>
    %c255_i32 = arith.constant 255 : i32
    %73 = vector.broadcast %c255_i32 : i32 to vector<1x256xi32>
    %74 = arith.subi %73, %69 : vector<1x256xi32>
    %75 = arith.ori %72, %74 : vector<1x256xi32>
    %76 = tpu.bitcast %75 : vector<1x256xi32> -> vector<1x256xf32>
    %cst_18 = arith.constant -1.000000e+30 : f32
    %77 = vector.broadcast %cst_18 : f32 to vector<1x256xf32>
    %78 = arith.select %68, %76, %77 : vector<1x256xi1>, vector<1x256xf32>
    %cst_19 = arith.constant 0.000000e+00 : f32
    %79 = vector.broadcast %cst_19 : f32 to vector<2x256xf32>
    %80 = arith.subf %79, %46 : vector<2x256xf32>
    %81 = tpu.concatenate %45, %80, %66, %58, %59, %59 in 0 : vector<2x256xf32>, vector<2x256xf32>, vector<1x256xf32>, vector<1x256xf32>, vector<1x256xf32>, vector<1x256xf32> -> vector<8x256xf32>
    %cst_20 = arith.constant 0.000000e+00 : f32
    %82 = vector.broadcast %cst_20 : f32 to vector<1x256xf32>
    %cst_21 = arith.constant dense<0xFF800000> : vector<1xf32>
    %83 = vector.multi_reduction <maximumf>, %78, %cst_21 [1] : vector<1x256xf32> to vector<1xf32>
    %84 = vector.shape_cast %83 : vector<1xf32> to vector<1x1xf32>
    %85:3 = scf.while (%arg5 = %78, %arg6 = %82, %arg7 = %84) : (vector<1x256xf32>, vector<1x256xf32>, vector<1x1xf32>) -> (vector<1x256xf32>, vector<1x256xf32>, vector<1x1xf32>) {
      %89 = vector.extract %arg7[0, 0] : f32 from vector<1x1xf32>
      %cst_26 = arith.constant -1.000000e+29 : f32
      %90 = arith.cmpf ogt, %89, %cst_26 : f32
      scf.condition(%90) %arg5, %arg6, %arg7 : vector<1x256xf32>, vector<1x256xf32>, vector<1x1xf32>
    } do {
    ^bb0(%arg5: vector<1x256xf32>, %arg6: vector<1x256xf32>, %arg7: vector<1x1xf32>):
      %89 = vector.broadcast %arg7 : vector<1x1xf32> to vector<1x256xf32>
      %90 = arith.cmpf oge, %arg5, %89 : vector<1x256xf32>
      %cst_26 = arith.constant -1.000000e+30 : f32
      %91 = vector.shape_cast %90 : vector<1x256xi1> to vector<1x256xi1>
      %92 = vector.broadcast %91 : vector<1x256xi1> to vector<8x256xi1>
      %93 = vector.broadcast %cst_26 : f32 to vector<8x256xf32>
      %94 = arith.select %92, %81, %93 : vector<8x256xi1>, vector<8x256xf32>
      %cst_27 = arith.constant dense<0xFF800000> : vector<8xf32>
      %95 = vector.multi_reduction <maximumf>, %94, %cst_27 [1] : vector<8x256xf32> to vector<8xf32>
      %96 = vector.shape_cast %95 : vector<8xf32> to vector<8x1xf32>
      %97 = vector.extract_strided_slice %96 {offsets = [0, 0], sizes = [4, 1], strides = [1, 1]} : vector<8x1xf32> to vector<4x1xf32>
      %98 = vector.extract_strided_slice %81 {offsets = [0, 0], sizes = [4, 256], strides = [1, 1]} : vector<8x256xf32> to vector<4x256xf32>
      %99 = vector.broadcast %97 : vector<4x1xf32> to vector<4x256xf32>
      %100 = arith.maximumf %99, %98 : vector<4x256xf32>
      %101 = vector.extract_strided_slice %100 {offsets = [2, 0], sizes = [1, 256], strides = [1, 1]} : vector<4x256xf32> to vector<1x256xf32>
      %102 = vector.extract_strided_slice %100 {offsets = [0, 0], sizes = [1, 256], strides = [1, 1]} : vector<4x256xf32> to vector<1x256xf32>
      %103 = arith.addf %101, %102 : vector<1x256xf32>
      %cst_28 = arith.constant 0.000000e+00 : f32
      %104 = vector.broadcast %cst_28 : f32 to vector<1x256xf32>
      %105 = arith.subf %104, %103 : vector<1x256xf32>
      %cst_29 = arith.constant 0.000000e+00 : f32
      %106 = vector.broadcast %cst_29 : f32 to vector<1x256xf32>
      %107 = arith.maximumf %105, %106 : vector<1x256xf32>
      %108 = vector.extract_strided_slice %100 {offsets = [3, 0], sizes = [1, 256], strides = [1, 1]} : vector<4x256xf32> to vector<1x256xf32>
      %109 = vector.extract_strided_slice %100 {offsets = [1, 0], sizes = [1, 256], strides = [1, 1]} : vector<4x256xf32> to vector<1x256xf32>
      %110 = arith.addf %108, %109 : vector<1x256xf32>
      %cst_30 = arith.constant 0.000000e+00 : f32
      %111 = vector.broadcast %cst_30 : f32 to vector<1x256xf32>
      %112 = arith.subf %111, %110 : vector<1x256xf32>
      %cst_31 = arith.constant 0.000000e+00 : f32
      %113 = vector.broadcast %cst_31 : f32 to vector<1x256xf32>
      %114 = arith.maximumf %112, %113 : vector<1x256xf32>
      %115 = arith.mulf %107, %114 : vector<1x256xf32>
      %116 = vector.extract_strided_slice %96 {offsets = [4, 0], sizes = [1, 1], strides = [1, 1]} : vector<8x1xf32> to vector<1x1xf32>
      %117 = vector.extract_strided_slice %81 {offsets = [4, 0], sizes = [1, 256], strides = [1, 1]} : vector<8x256xf32> to vector<1x256xf32>
      %118 = vector.broadcast %116 : vector<1x1xf32> to vector<1x256xf32>
      %119 = arith.addf %118, %117 : vector<1x256xf32>
      %120 = arith.subf %119, %115 : vector<1x256xf32>
      %cst_32 = arith.constant 5.000000e-01 : f32
      %121 = vector.broadcast %cst_32 : f32 to vector<1x256xf32>
      %122 = arith.mulf %121, %120 : vector<1x256xf32>
      %123 = arith.cmpf ogt, %115, %122 : vector<1x256xf32>
      %124 = vector.extract_strided_slice %81 {offsets = [5, 0], sizes = [1, 256], strides = [1, 1]} : vector<8x256xf32> to vector<1x256xf32>
      %125 = vector.extract_strided_slice %96 {offsets = [5, 0], sizes = [1, 1], strides = [1, 1]} : vector<8x1xf32> to vector<1x1xf32>
      %126 = vector.broadcast %125 : vector<1x1xf32> to vector<1x256xf32>
      %127 = arith.cmpf oeq, %124, %126 : vector<1x256xf32>
      %128 = arith.andi %123, %127 : vector<1x256xi1>
      %cst_33 = arith.constant 1.000000e+00 : f32
      %129 = vector.broadcast %cst_33 : f32 to vector<1x256xf32>
      %130 = arith.select %90, %129, %arg6 : vector<1x256xi1>, vector<1x256xf32>
      %131 = arith.ori %90, %128 : vector<1x256xi1>
      %cst_34 = arith.constant -1.000000e+30 : f32
      %132 = vector.broadcast %cst_34 : f32 to vector<1x256xf32>
      %133 = arith.select %131, %132, %arg5 : vector<1x256xi1>, vector<1x256xf32>
      %cst_35 = arith.constant dense<0xFF800000> : vector<1xf32>
      %134 = vector.multi_reduction <maximumf>, %133, %cst_35 [1] : vector<1x256xf32> to vector<1xf32>
      %135 = vector.shape_cast %134 : vector<1xf32> to vector<1x1xf32>
      scf.yield %133, %130, %135 : vector<1x256xf32>, vector<1x256xf32>, vector<1x1xf32>
    }
    %86 = tpu.concatenate %45, %46, %59 in 0 : vector<2x256xf32>, vector<2x256xf32>, vector<1x256xf32> -> vector<5x256xf32>
    %c0_22 = arith.constant 0 : index
    %c0_23 = arith.constant 0 : index
    %87 = vector.load %arg3[%c0_22, %c0_23] : memref<5x256xf32, #tpu.memory_space<vmem>>, vector<5x256xf32>
    tpu.vector_store %arg3[%c0_22, %c0_23], %86 {strides = array<i32>} : memref<5x256xf32, #tpu.memory_space<vmem>>, vector<5x256xf32>,
    %c0_24 = arith.constant 0 : index
    %c0_25 = arith.constant 0 : index
    %88 = vector.load %arg4[%c0_24, %c0_25] : memref<1x256xf32, #tpu.memory_space<vmem>>, vector<1x256xf32>
    tpu.vector_store %arg4[%c0_24, %c0_25], %85#1 {strides = array<i32>} : memref<1x256xf32, #tpu.memory_space<vmem>>, vector<1x256xf32>,
    return
  }
}

</mosaic_0001>

<llo_original>
// kernel: squeeze.2
$region0: #{squeeze.2}
  %s0 = inlined_call_operand.vmem [shape: f32[1,4,16,16], index: 0, kind: input, shape index: {}]
  %s1 = inlined_call_operand.vmem [shape: f32[4,256], index: 1, kind: output, shape index: {}]
  $region1: #{squeeze.2} parent=0
    #allocation0 [shape = 'u8[8192]{0}', space=vmem, size = 0x2000, scoped, tag = 'scoped mem for output reshape']
    %v2 = vld [vmem:[%s0] ss:$8 sm:$0xf]
    %v3 = vld [vmem:[%s0] ss:$8 sm:$0xf0]
    %vm4 = vcmask 1047556
    %v5 = vsel %vm4, %v3, %v2
    %vm6 = vcmask 130048
    %7 = vst.msk [vmem:[#allocation0] ss:$8 sm:$0x3] %vm6, %v5
    %s8 = scalar_lea.vmem [#allocation0], 4294967281
    %9 = vst.msk [vmem:[%s8] ss:$8 sm:$0xc] %vm6, %v5
    %s10 = scalar_lea.vmem [#allocation0], 4294967266
    %11 = vst.msk [vmem:[%s10] ss:$8 sm:$0x30] %vm6, %v5
    %s12 = scalar_lea.vmem [#allocation0], 4294967251
    %13 = vst.msk [vmem:[%s12] ss:$8 sm:$0xc0] %vm6, %v5
    %s14 = scalar_lea.vmem %s0, 7
    %s15 = smov 3
    %v16 = vld [vmem:[%s14] ss:$16 sm:%s15]
    %s17 = scalar_lea.vmem %s0, 7
    %s18 = smov 12
    %v19 = vld [vmem:[%s17] ss:$16 sm:%s18]
    %vm20 = vcmask 1043458
    %v21 = vsel %vm20, %v19, %v16
    %s22 = scalar_lea.vmem %s0, 4294967247
    %s23 = smov 48
    %v24 = vld [vmem:[%s22] ss:$16 sm:%s23]
    %vm25 = vcmask 1045508
    %v26 = vsel %vm25, %v24, %v21
    %s27 = scalar_lea.vmem %s0, 4294967247
    %s28 = smov 192
    %v29 = vld [vmem:[%s27] ss:$16 sm:%s28]
    %vm30 = vcmask 1047558
    %v31 = vsel %vm30, %v29, %v26
    %32 = vrot.lane.b32.xlu0 %v31, 112
    %v33 = vpop.permute.xlu0 %32
    %vm34 = vcmask 1048448
    %35 = vst.msk [vmem:[#allocation0] sm:$0xf] %vm34, %v33
    %s36 = scalar_lea.vmem [#allocation0], 4
    %37 = vst.msk [vmem:[%s36] sm:$0xf0] %vm34, %v33
    %s38 = scalar_lea.vmem %s0, 6
    %s39 = smov 3
    %v40 = vld [vmem:[%s38] ss:$16 sm:%s39]
    %s41 = scalar_lea.vmem %s0, 6
    %s42 = smov 12
    %v43 = vld [vmem:[%s41] ss:$16 sm:%s42]
    %vm44 = vcmask 1043458
    %v45 = vsel %vm44, %v43, %v40
    %s46 = scalar_lea.vmem %s0, 4294967246
    %s47 = smov 48
    %v48 = vld [vmem:[%s46] ss:$16 sm:%s47]
    %vm49 = vcmask 1045508
    %v50 = vsel %vm49, %v48, %v45
    %s51 = scalar_lea.vmem %s0, 4294967246
    %s52 = smov 192
    %v53 = vld [vmem:[%s51] ss:$16 sm:%s52]
    %vm54 = vcmask 1047558
    %v55 = vsel %vm54, %v53, %v50
    %56 = vrot.lane.b32.xlu0 %v55, 96
    %v57 = vpop.permute.xlu0 %56
    %vm58 = vcmask 917248
    %59 = vst.msk [vmem:[#allocation0] sm:$0xf] %vm58, %v57
    %s60 = scalar_lea.vmem [#allocation0], 4
    %61 = vst.msk [vmem:[%s60] sm:$0xf0] %vm58, %v57
    %s62 = scalar_lea.vmem %s0, 5
    %s63 = smov 3
    %v64 = vld [vmem:[%s62] ss:$16 sm:%s63]
    %s65 = scalar_lea.vmem %s0, 5
    %s66 = smov 12
    %v67 = vld [vmem:[%s65] ss:$16 sm:%s66]
    %vm68 = vcmask 1043458
    %v69 = vsel %vm68, %v67, %v64
    %s70 = scalar_lea.vmem %s0, 4294967245
    %s71 = smov 48
    %v72 = vld [vmem:[%s70] ss:$16 sm:%s71]
    %vm73 = vcmask 1045508
    %v74 = vsel %vm73, %v72, %v69
    %s75 = scalar_lea.vmem %s0, 4294967245
    %s76 = smov 192
    %v77 = vld [vmem:[%s75] ss:$16 sm:%s76]
    %vm78 = vcmask 1047558
    %v79 = vsel %vm78, %v77, %v74
    %80 = vrot.lane.b32.xlu0 %v79, 80
    %v81 = vpop.permute.xlu0 %80
    %vm82 = vcmask 786048
    %83 = vst.msk [vmem:[#allocation0] sm:$0xf] %vm82, %v81
    %s84 = scalar_lea.vmem [#allocation0], 4
    %85 = vst.msk [vmem:[%s84] sm:$0xf0] %vm82, %v81
    %s86 = scalar_lea.vmem %s0, 4
    %s87 = smov 3
    %v88 = vld [vmem:[%s86] ss:$16 sm:%s87]
    %s89 = scalar_lea.vmem %s0, 4
    %s90 = smov 12
    %v91 = vld [vmem:[%s89] ss:$16 sm:%s90]
    %vm92 = vcmask 1043458
    %v93 = vsel %vm92, %v91, %v88
    %s94 = scalar_lea.vmem %s0, 4294967244
    %s95 = smov 48
    %v96 = vld [vmem:[%s94] ss:$16 sm:%s95]
    %vm97 = vcmask 1045508
    %v98 = vsel %vm97, %v96, %v93
    %s99 = scalar_lea.vmem %s0, 4294967244
    %s100 = smov 192
    %v101 = vld [vmem:[%s99] ss:$16 sm:%s100]
    %vm102 = vcmask 1047558
    %v103 = vsel %vm102, %v101, %v98
    %104 = vrot.lane.b32.xlu0 %v103, 64
    %v105 = vpop.permute.xlu0 %104
    %vm106 = vcmask 654848
    %107 = vst.msk [vmem:[#allocation0] sm:$0xf] %vm106, %v105
    %s108 = scalar_lea.vmem [#allocation0], 4
    %109 = vst.msk [vmem:[%s108] sm:$0xf0] %vm106, %v105
    %s110 = scalar_lea.vmem %s0, 3
    %s111 = smov 3
    %v112 = vld [vmem:[%s110] ss:$16 sm:%s111]
    %s113 = scalar_lea.vmem %s0, 3
    %s114 = smov 12
    %v115 = vld [vmem:[%s113] ss:$16 sm:%s114]
    %vm116 = vcmask 1043458
    %v117 = vsel %vm116, %v115, %v112
    %s118 = scalar_lea.vmem %s0, 4294967243
    %s119 = smov 48
    %v120 = vld [vmem:[%s118] ss:$16 sm:%s119]
    %vm121 = vcmask 1045508
    %v122 = vsel %vm121, %v120, %v117
    %s123 = scalar_lea.vmem %s0, 4294967243
    %s124 = smov 192
    %v125 = vld [vmem:[%s123] ss:$16 sm:%s124]
    %vm126 = vcmask 1047558
    %v127 = vsel %vm126, %v125, %v122
    %128 = vrot.lane.b32.xlu0 %v127, 48
    %v129 = vpop.permute.xlu0 %128
    %vm130 = vcmask 523648
    %131 = vst.msk [vmem:[#allocation0] sm:$0xf] %vm130, %v129
    %s132 = scalar_lea.vmem [#allocation0], 4
    %133 = vst.msk [vmem:[%s132] sm:$0xf0] %vm130, %v129
    %s134 = scalar_lea.vmem %s0, 2
    %s135 = smov 3
    %v136 = vld [vmem:[%s134] ss:$16 sm:%s135]
    %s137 = scalar_lea.vmem %s0, 2
    %s138 = smov 12
    %v139 = vld [vmem:[%s137] ss:$16 sm:%s138]
    %vm140 = vcmask 1043458
    %v141 = vsel %vm140, %v139, %v136
    %s142 = scalar_lea.vmem %s0, 4294967242
    %s143 = smov 48
    %v144 = vld [vmem:[%s142] ss:$16 sm:%s143]
    %vm145 = vcmask 1045508
    %v146 = vsel %vm145, %v144, %v141
    %s147 = scalar_lea.vmem %s0, 4294967242
    %s148 = smov 192
    %v149 = vld [vmem:[%s147] ss:$16 sm:%s148]
    %vm150 = vcmask 1047558
    %v151 = vsel %vm150, %v149, %v146
    %152 = vrot.lane.b32.xlu0 %v151, 32
    %v153 = vpop.permute.xlu0 %152
    %vm154 = vcmask 392448
    %155 = vst.msk [vmem:[#allocation0] sm:$0xf] %vm154, %v153
    %s156 = scalar_lea.vmem [#allocation0], 4
    %157 = vst.msk [vmem:[%s156] sm:$0xf0] %vm154, %v153
    %s158 = scalar_lea.vmem %s0, 1
    %s159 = smov 3
    %v160 = vld [vmem:[%s158] ss:$16 sm:%s159]
    %s161 = scalar_lea.vmem %s0, 1
    %s162 = smov 12
    %v163 = vld [vmem:[%s161] ss:$16 sm:%s162]
    %vm164 = vcmask 1043458
    %v165 = vsel %vm164, %v163, %v160
    %s166 = scalar_lea.vmem %s0, 4294967241
    %s167 = smov 48
    %v168 = vld [vmem:[%s166] ss:$16 sm:%s167]
    %vm169 = vcmask 1045508
    %v170 = vsel %vm169, %v168, %v165
    %s171 = scalar_lea.vmem %s0, 4294967241
    %s172 = smov 192
    %v173 = vld [vmem:[%s171] ss:$16 sm:%s172]
    %vm174 = vcmask 1047558
    %v175 = vsel %vm174, %v173, %v170
    %176 = vrot.lane.b32.xlu0 %v175, 16
    %v177 = vpop.permute.xlu0 %176
    %vm178 = vcmask 261248
    %179 = vst.msk [vmem:[#allocation0] sm:$0xf] %vm178, %v177
    %s180 = scalar_lea.vmem [#allocation0], 4
    %181 = vst.msk [vmem:[%s180] sm:$0xf0] %vm178, %v177
    %s183 = sshllo.u32 0, 4
    %v185 = vld [vmem:[#allocation0] sm:%s183]
    %s186 = sshllo.u32 0, 4
    %187 = vst [vmem:[%s1] sm:%s186] %v185
    %s188 = scalar_lea.vmem [#allocation0], 8
    %v189 = vld [vmem:[%s188] sm:%s183]
    %s190 = sshllo.u32 0, 4
    %s191 = scalar_lea.vmem %s1, 4
    %192 = vst [vmem:[%s191] sm:%s190] %v189

// kernel: post_model_forward.1
$region0: #{post_model_forward.1}
  #allocation0 [shape = 'u32[]', space=smem, size = 0x4, offset = 0x4, fixed_abs, tag = 'smem constant byte address 0x4 - core index']
  #allocation1 [shape = 'u32[144,128]{1,0:T(1,128)}', space=vmem, size = 0x12000, scoped, tag = 'internal scratch']
  %s0 = inlined_call_operand.vmem [shape: f32[4,256], index: 0, kind: input, shape index: {}]
  %s1 = inlined_call_operand.vmem [shape: f32[4,8,1], index: 1, kind: input, shape index: {}]
  %s2 = inlined_call_operand.vmem [shape: f32[8,1], index: 2, kind: input, shape index: {}]
  %s3 = inlined_call_operand.hbm [shape: f32[5,256], index: 3, kind: output, shape index: {0}]
  %s4 = inlined_call_operand.vmem [shape: f32[1,256], index: 4, kind: output, shape index: {1}]
  %5 = xla_tuple %s3, %s4
  %s6 = sld [smem:[#allocation0]]
  $region37: #{post_model_forward.1} parent=0
    _
  %s8 = ssub.s32 1, %s6
  %s9 = scalar_select 0, %s8, %s6
  $region1: #{post_model_forward.1} parent=0
    #allocation2 [shape = 'u8[8192]{0}', space=vmem, size = 0x2000, scoped, tag = 'output window, operand 0, single buffered']
    #allocation3 [shape = 's32[1]{0}', space=sflag, size = 0x4, scoped, tag = 'scoped memory for post_model_forward.1']
    %10 = vsyncpa [#allocation3], 0
    // Predicated region
    $region2: #{post_model_forward.1} parent=1 // pred_check
      _
    $region3: #{post_model_forward.1} parent=1 // pred_check_branch
      %12 = sbr.rel (0) target = $region5
    $region4: #{post_model_forward.1} parent=1 // pred_region
      _
    $region5: #{post_model_forward.1} parent=1 // pred_fallthru
      _
    // Predicated region
    $region6: #{post_model_forward.1} parent=1 // pred_check
      _
    $region7: #{post_model_forward.1} parent=1 // pred_check_branch
      %14 = sbr.rel (0) target = $region9
    $region8: #{post_model_forward.1} parent=1 // pred_region
      _
    $region9: #{post_model_forward.1} parent=1 // pred_fallthru
      _
    // Predicated region
    $region10: #{post_model_forward.1} parent=1 // pred_check
      _
    $region11: #{post_model_forward.1} parent=1 // pred_check_branch
      %16 = sbr.rel (0) target = $region13
    $region12: #{post_model_forward.1} parent=1 // pred_region
      _
    $region13: #{post_model_forward.1} parent=1 // pred_fallthru
      _
    %v17 = vld [vmem:[%s0] sm:$0xff]
    %v18 = vld [vmem:[%s2] sm:$0xff]
    %v19 = vld [vmem:[%s1] sm:$0xff]
    %21 = vset.pattern.permute.xlu0 0
    %22 = vperm.xlu0 %21, %v19
    %v23 = vpop.permute.xlu0 %22
    %v26 = vlaneseq
    %v27 = vshrl.u32 %v26, 7
    %v28 = vsub.s32 0, %v27
    %v29 = vrot.slane %v17, %v28
    %v30 = vlaneseq
    %v31 = vshrl.u32 %v30, 7
    %v32 = vsub.s32 4, %v31
    %v33 = vrot.slane %v17, %v32
    %v36 = vlaneseq
    %v37 = vshrl.u32 %v36, 7
    %v38 = vsub.s32 0, %v37
    %v39 = vrot.slane %v29, %v38
    %v40 = vlaneseq
    %v41 = vshrl.u32 %v40, 7
    %v42 = vsub.s32 0, %v41
    %v43 = vrot.slane %v33, %v42
    %v44 = vmul.f32 %v23, %v39
    %v45 = vmul.f32 %v23, %v43
    %47 = vset.pattern.permute.xlu0 0
    %48 = vperm.xlu0 %47, %v18
    %v49 = vpop.permute.xlu0 %48
    %v51 = vadd.f32 %v49, %v44
    %v52 = vadd.f32 %v49, %v45
    %s53 = scalar_lea.vmem %s1, 8
    %v54 = vld [vmem:[%s53] sm:$0xff]
    %56 = vset.pattern.permute.xlu0 0
    %57 = vperm.xlu0 %56, %v54
    %v58 = vpop.permute.xlu0 %57
    %v60 = vlaneseq
    %v61 = vshrl.u32 %v60, 7
    %v62 = vsub.s32 1, %v61
    %v63 = vrot.slane %v17, %v62
    %v64 = vlaneseq
    %v65 = vshrl.u32 %v64, 7
    %v66 = vsub.s32 5, %v65
    %v67 = vrot.slane %v17, %v66
    %v70 = vlaneseq
    %v71 = vshrl.u32 %v70, 7
    %v72 = vsub.s32 1, %v71
    %v73 = vrot.slane %v63, %v72
    %v74 = vlaneseq
    %v75 = vshrl.u32 %v74, 7
    %v76 = vsub.s32 1, %v75
    %v77 = vrot.slane %v67, %v76
    %v78 = vmul.f32 %v58, %v73
    %v79 = vmul.f32 %v58, %v77
    %v80 = vadd.f32 %v51, %v78
    %v81 = vadd.f32 %v52, %v79
    %s82 = scalar_lea.vmem %s1, 16
    %v83 = vld [vmem:[%s82] sm:$0xff]
    %85 = vset.pattern.permute.xlu0 0
    %86 = vperm.xlu0 %85, %v83
    %v87 = vpop.permute.xlu0 %86
    %v89 = vlaneseq
    %v90 = vshrl.u32 %v89, 7
    %v91 = vsub.s32 2, %v90
    %v92 = vrot.slane %v17, %v91
    %v93 = vlaneseq
    %v94 = vshrl.u32 %v93, 7
    %v95 = vsub.s32 6, %v94
    %v96 = vrot.slane %v17, %v95
    %v99 = vlaneseq
    %v100 = vshrl.u32 %v99, 7
    %v101 = vsub.s32 2, %v100
    %v102 = vrot.slane %v92, %v101
    %v103 = vlaneseq
    %v104 = vshrl.u32 %v103, 7
    %v105 = vsub.s32 2, %v104
    %v106 = vrot.slane %v96, %v105
    %v107 = vmul.f32 %v87, %v102
    %v108 = vmul.f32 %v87, %v106
    %v109 = vadd.f32 %v80, %v107
    %v110 = vadd.f32 %v81, %v108
    %s111 = scalar_lea.vmem %s1, 24
    %v112 = vld [vmem:[%s111] sm:$0xff]
    %114 = vset.pattern.permute.xlu0 0
    %115 = vperm.xlu0 %114, %v112
    %v116 = vpop.permute.xlu0 %115
    %v118 = vlaneseq
    %v119 = vshrl.u32 %v118, 7
    %v120 = vsub.s32 3, %v119
    %v121 = vrot.slane %v17, %v120
    %v122 = vlaneseq
    %v123 = vshrl.u32 %v122, 7
    %v124 = vsub.s32 7, %v123
    %v125 = vrot.slane %v17, %v124
    %v128 = vlaneseq
    %v129 = vshrl.u32 %v128, 7
    %v130 = vsub.s32 3, %v129
    %v131 = vrot.slane %v121, %v130
    %v132 = vlaneseq
    %v133 = vshrl.u32 %v132, 7
    %v134 = vsub.s32 3, %v133
    %v135 = vrot.slane %v125, %v134
    %v136 = vmul.f32 %v116, %v131
    %v137 = vmul.f32 %v116, %v135
    %v138 = vadd.f32 %v109, %v136
    %v139 = vadd.f32 %v110, %v137
    %v140 = vmin.f32 %v138, 43.0
    %v141 = vmin.f32 %v139, 43.0
    %v142 = vmul.f32 %v140, 1.442695
    %v143 = vpow.pop %v142
    %v144 = vmul.f32 %v141, 1.442695
    %v145 = vpow.pop %v144
    %v146 = vxor.u32 %v138, 2147483648
    %v147 = vxor.u32 %v139, 2147483648
    %v148 = vmul.f32 %v146, 1.442695
    %v149 = vpow.pop %v148
    %v150 = vmul.f32 %v147, 1.442695
    %v151 = vpow.pop %v150
    %v152 = vadd.f32 %v149, 1.0
    %v153 = vadd.f32 %v151, 1.0
    %v154 = vrcp.pop %v152
    %v155 = vmul.f32 1.0, %v154
    %v156 = vrcp.pop %v153
    %v157 = vmul.f32 1.0, %v156
    %v158 = vmul.f32 %v143, 0.5
    %v159 = vmul.f32 %v145, 0.5
    %v162 = vrot.slane %v158, 2
    %v163 = vrot.slane %v159, 2
    %v166 = vsub.f32 %v138, %v162
    %v167 = vsub.f32 %v139, %v163
    %v168 = vadd.f32 %v138, %v162
    %v169 = vadd.f32 %v139, %v163
    %v172 = vrot.slane %v155, 7
    %v173 = vrot.slane %v157, 7
    %vm176 = vcmp.gt.f32.partialorder %v155, %v172
    %vm177 = vcmp.gt.f32.partialorder %v157, %v173
    %v178 = vsel %vm176, %v155, %v172
    %v179 = vsel %vm177, %v157, %v173
    %v180 = vsel %vm176, 1.0, 0.0
    %v181 = vsel %vm177, 1.0, 0.0
    %v184 = vrot.slane %v178, 7
    %v185 = vrot.slane %v179, 7
    %vm188 = vcmp.gt.f32.partialorder %v155, %v184
    %vm189 = vcmp.gt.f32.partialorder %v157, %v185
    %v190 = vsel %vm188, %v155, %v184
    %v191 = vsel %vm189, %v157, %v185
    %v194 = vrot.slane %v180, 7
    %v195 = vrot.slane %v181, 7
    %v198 = vsel %vm188, 2.0, %v194
    %v199 = vsel %vm189, 2.0, %v195
    %v202 = vrot.slane %v190, 3
    %v203 = vrot.slane %v191, 3
    %v206 = vmul.f32 %v155, %v202
    %v207 = vmul.f32 %v157, %v203
    %v208 = vsub.f32 %v168, %v166
    %v209 = vsub.f32 %v169, %v167
    %v212 = vrot.slane %v208, 1
    %v213 = vrot.slane %v209, 1
    %v216 = vmul.f32 %v208, %v212
    %v217 = vmul.f32 %v209, %v213
    %vm218 = vcmp.ge.f32.partialorder %v206, 0.3
    %vm219 = vcmp.ge.f32.partialorder %v207, 0.3
    %v220 = vlaneseq
    %v221 = vand.u32 %v220, 127
    %v222 = vadd.s32 %v221, 128
    %v225 = vand.u32 %v206, 4294967040
    %v226 = vand.u32 %v207, 4294967040
    %v227 = vsub.s32 255, %v221
    %v228 = vsub.s32 255, %v222
    %v229 = vor.u32 %v225, %v227
    %v230 = vor.u32 %v226, %v228
    %v233 = vsel %vm218, %v229, -1e+30
    %v234 = vsel %vm219, %v230, -1e+30
    %v235 = vsub.f32 0.0, %v168
    %v236 = vsub.f32 0.0, %v169
    %v239 = vrot.slane %v235, 6
    %v240 = vrot.slane %v236, 6
    %v245 = vrot.slane %v216, 4
    %v246 = vrot.slane %v217, 4
    %v251 = vrot.slane %v198, 2
    %v252 = vrot.slane %v199, 2
    %v255 = vrot.slane %v206, 6
    %v256 = vrot.slane %v207, 6
    %v259 = vrot.slane %v206, 5
    %v260 = vrot.slane %v207, 5
    %vm263 = vcmask 1041408
    %v264 = vsel %vm263, %v166, %v239
    %v265 = vsel %vm263, %v167, %v240
    %vm266 = vcmask 1043456
    %v267 = vsel %vm266, %v264, %v245
    %v268 = vsel %vm266, %v265, %v246
    %vm269 = vcmask 1044480
    %v270 = vsel %vm269, %v267, %v251
    %v271 = vsel %vm269, %v268, %v252
    %vm272 = vcmask 1045504
    %v273 = vsel %vm272, %v270, %v255
    %v274 = vsel %vm272, %v271, %v256
    %vm275 = vcmask 1046528
    %v276 = vsel %vm275, %v273, %v259
    %v277 = vsel %vm275, %v274, %v260
    %vm278 = vcmask 1044484
    %v279 = vsel %vm278, %v233, -inf
    %v280 = vsel %vm278, %v234, -inf
    %v281 = vmax.f32 %v279, %v280
    %282 = vmax.xlane.f32.xlu0 %v281
    %v283 = vpop.xlane.xlu0 %282
    // While loop
    $region14: #{post_model_forward.1} parent=1 // loop_pre_header
      _
    $region15: #{post_model_forward.1} parent=1 // loop_header
      %v285 = vphi %v233, %v379
      %v286 = vphi %v234, %v380
      %v287 = vphi 0.0, %v369
      %v288 = vphi 0.0, %v370
      %v289 = vphi %v283, %v385
      %v291 = vrot.slane %v289, 4
      %s293 = vtos %v291
      %p294 = scmp.gt.f32.partialorder %s293, -1e+29
      %p295 = pneg %p294
    $region16: #{post_model_forward.1} parent=1 // loop_header_branch
      %297 = sbr.rel (%p295) target = $region20
    $region17: #{post_model_forward.1} parent=1 // loop_body
      %vm298 = vcmp.ge.f32.partialorder %v285, %v289
      %vm299 = vcmp.ge.f32.partialorder %v286, %v289
      %v300 = vsel %vm298, 1, 0
      %v301 = vsel %vm299, 1, 0
      %v302 = vlaneseq
      %v303 = vshrl.u32 %v302, 7
      %v304 = vsub.s32 4, %v303
      %v305 = vrot.slane %v300, %v304
      %v306 = vlaneseq
      %v307 = vshrl.u32 %v306, 7
      %v308 = vsub.s32 4, %v307
      %v309 = vrot.slane %v301, %v308
      %vm310 = vcmp.eq.s32.totalorder %v305, 1
      %vm311 = vcmp.eq.s32.totalorder %v309, 1
      %v312 = vsel %vm310, %v276, -1e+30
      %v313 = vsel %vm311, %v277, -1e+30
      %v314 = vmax.f32 %v312, %v313
      %315 = vmax.xlane.f32.xlu0 %v314
      %v316 = vpop.xlane.xlu0 %315
      %v317 = vmax.f32 %v316, %v276
      %v318 = vmax.f32 %v316, %v277
      %v321 = vrot.slane %v317, 6
      %v322 = vrot.slane %v318, 6
      %v325 = vadd.f32 %v317, %v321
      %v326 = vadd.f32 %v318, %v322
      %v327 = vsub.f32 0.0, %v325
      %v328 = vsub.f32 0.0, %v326
      %v329 = vmax.f32 %v327, 0.0
      %v330 = vmax.f32 %v328, 0.0
      %v333 = vrot.slane %v329, 1
      %v334 = vrot.slane %v330, 1
      %v337 = vmul.f32 %v329, %v333
      %v338 = vmul.f32 %v330, %v334
      %v339 = vadd.f32 %v316, %v276
      %v340 = vadd.f32 %v316, %v277
      %v343 = vrot.slane %v337, 6
      %v344 = vrot.slane %v338, 6
      %v347 = vsub.f32 %v339, %v343
      %v348 = vsub.f32 %v340, %v344
      %v349 = vmul.f32 %v347, 0.5
      %v350 = vmul.f32 %v348, 0.5
      %v353 = vrot.slane %v349, 2
      %v354 = vrot.slane %v350, 2
      %vm357 = vcmp.gt.f32.partialorder %v337, %v353
      %vm358 = vcmp.gt.f32.partialorder %v338, %v354
      %vm359 = vcmp.eq.f32.partialorder %v276, %v316
      %vm360 = vcmp.eq.f32.partialorder %v277, %v316
      %v361 = vsel %vm359, 1, 0
      %v362 = vsel %vm360, 1, 0
      %v363 = vrot.slane %v361, 3
      %v364 = vrot.slane %v362, 3
      %vm365 = vcmp.ne.s32.totalorder %v363, 0
      %vm366 = vcmp.ne.s32.totalorder %v364, 0
      %vm367 = vmand %vm357, %vm365
      %vm368 = vmand %vm358, %vm366
      %v369 = vsel %vm298, 1.0, %v287
      %v370 = vsel %vm299, 1.0, %v288
      %v371 = vsel %vm367, 1, 0
      %v372 = vsel %vm368, 1, 0
      %v373 = vrot.slane %v371, 6
      %v374 = vrot.slane %v372, 6
      %vm375 = vcmp.ne.s32.totalorder %v373, 0
      %vm376 = vcmp.ne.s32.totalorder %v374, 0
      %vm377 = vmor %vm298, %vm375
      %vm378 = vmor %vm299, %vm376
      %v379 = vsel %vm377, -1e+30, %v285
      %v380 = vsel %vm378, -1e+30, %v286
      %v381 = vsel %vm278, %v379, -inf
      %v382 = vsel %vm278, %v380, -inf
      %v383 = vmax.f32 %v381, %v382
      %384 = vmax.xlane.f32.xlu0 %v383
      %v385 = vpop.xlane.xlu0 %384
    $region18: #{post_model_forward.1} parent=1 // loop_footer
      _
    $region19: #{post_model_forward.1} parent=1 // loop_footer_branch
      %284 = sbr.rel target = $region15
    $region20: #{post_model_forward.1} parent=1 // loop_exit
      _
    %v388 = vrot.slane %v168, 6
    %v389 = vrot.slane %v169, 6
    %v392 = vsel %vm263, %v166, %v388
    %v393 = vsel %vm263, %v167, %v389
    %v394 = vsel %vm266, %v392, %v206
    %v395 = vsel %vm266, %v393, %v207
    %396 = vst [vmem:[#allocation2] sm:$0x1f] %v394
    %397 = vst [vmem:[#allocation2 + $0x8] sm:$0x1f] %v395
    %v400 = vcombine.high %v287, %v288
    %v402 = vunpack.c.l.s4 1966171168
    %v403 = vunpack.c.0.s8 %v402
    %v404 = vlaneseq
    %v405 = vshrl.u32 %v404, 7
    %v406 = vsub.s32 %v403, %v405
    %v407 = vrot.slane %v400, %v406
    %v409 = vunpack.c.l.s4 1966171168
    %v410 = vunpack.c.0.s8 %v409
    %v411 = vlaneseq
    %v412 = vshrl.u32 %v411, 7
    %v413 = vsub.s32 %v410, %v412
    %v414 = vrot.slane %v407, %v413
    %v416 = vlaneseq
    %vm417 = vcmp.ge.s32.totalorder %v416, 0
    %vm418 = vcmp.lt.s32.totalorder %v416, 256
    %vm419 = vmand %vm417, %vm418
    %420 = vst.msk [vmem:[%s4] sm:$0x3] %vm419, %v414
    // Predicated region
    $region21: #{post_model_forward.1} parent=1 // pred_check
      _
    $region22: #{post_model_forward.1} parent=1 // pred_check_branch
      %422 = sbr.rel (0) target = $region24
    $region23: #{post_model_forward.1} parent=1 // pred_region
      %s424 = ssub.s32 256, 256
      %425 = vsyncadd [#allocation3], %s424
      %s427 = sshll.u32 [#allocation2], 4
      %s428 = int_to_ptr.vmem [resolvable:$true] %s427
      %430 = dma.vmem_to_hbm [thread:$0]  %s428, 256, %s3, [#allocation3]
    $region24: #{post_model_forward.1} parent=1 // pred_fallthru
      _
    // Predicated region
    $region25: #{post_model_forward.1} parent=1 // pred_check
      _
    $region26: #{post_model_forward.1} parent=1 // pred_check_branch
      %432 = sbr.rel (0) target = $region28
    $region27: #{post_model_forward.1} parent=1 // pred_region
      _
    $region28: #{post_model_forward.1} parent=1 // pred_fallthru
      _
    // Predicated region
    $region29: #{post_model_forward.1} parent=1 // pred_check
      _
    $region30: #{post_model_forward.1} parent=1 // pred_check_branch
      %434 = sbr.rel (0) target = $region32
    $region31: #{post_model_forward.1} parent=1 // pred_region
      %435 = dma.done [#allocation3], 256
    $region32: #{post_model_forward.1} parent=1 // pred_fallthru
      _
    // Predicated region
    $region33: #{post_model_forward.1} parent=1 // pred_check
      _
    $region34: #{post_model_forward.1} parent=1 // pred_check_branch
      %437 = sbr.rel (0) target = $region36
    $region35: #{post_model_forward.1} parent=1 // pred_region
      _
    $region36: #{post_model_forward.1} parent=1 // pred_fallthru
      _
    %438 = vsyncpa [#allocation3], 1

</llo_original>
